<compile_context>
chip_gen: v7x
topology: tpu7x:2x2x1
jax: 0.10.0
libtpu: 0.0.40
codegen_flags: <defaults>
</compile_context>

<pallas_src>
import jax
import jax.numpy as jnp
from jax.experimental import pallas as pl
from jax.experimental.pallas import tpu as pltpu

IMAGENET_MEAN = (0.485, 0.456, 0.406)
IMAGENET_STD = (0.229, 0.224, 0.225)


def imagenet_head_kernel(x_ref, w1_ref, b1_ref, w2_ref, b2_ref, o_ref):
    """Whole batch in one invocation.

    x_ref : (B, C, HW)   raw images, spatial flattened onto the lane axis
    w1_ref: (C, Hd, 1)   normalize-folded 1x1-conv weights (one (Hd,1) col/ch)
    b1_ref: (1, Hd, 1)   normalize-folded 1x1-conv bias
    w2_ref: (Hd, NCp)    FC weights, 1/HW-scaled, classes padded to 128 lanes
    b2_ref: (1, NCp)     FC bias (padded)
    o_ref : (B, NCp)     padded logits (lane-dense store)
    """
    # x.clamp(0, 1); Normalize(mean, std) is folded into w1/b1 on the host.
    x = jnp.clip(x_ref[...], 0.0, 1.0)                  # (B, C, HW)

    # 1x1 conv over channels as C broadcast FMAs on the VPU:
    #   (1, Hd, 1) * (B, 1, HW) -> (B, Hd, HW)
    c_dim = x.shape[1]
    acc = w1_ref[0:1] * x[:, 0:1, :]
    for c in range(1, c_dim):                           # C=3, unrolled at trace
        acc = acc + w1_ref[c:c + 1] * x[:, c:c + 1, :]
    h = jnp.maximum(acc + b1_ref[...], 0.0)             # (B, Hd, HW), ReLU

    # global average pool: plain sum over the lane axis (1/HW folded into w2)
    pooled = jnp.sum(h, axis=2)                         # (B, Hd)

    # fully-connected classifier for the whole batch in one MXU matmul
    logits = (
        jnp.dot(pooled, w2_ref[...], preferred_element_type=jnp.float32)
        + b2_ref[...]
    )                                                   # (B, NCp)
    o_ref[...] = logits


def imagenet_pretrained_forward(x, params):
    """x: (B, C, H, W) float32 NCHW in ~[0, 1]. Returns (B, NC) logits."""
    w1, b1, w2, b2 = params              # (Hd,C), (Hd,1), (Hd,NC), (1,NC)
    B, C, H, W = x.shape
    HW = H * W
    Hd = w1.shape[0]
    NC = w2.shape[1]
    NCp = ((NC + 127) // 128) * 128      # pad classes -> lane-dense output store

    # Fold Normalize(mean, std) into the first conv (host-side, tiny tensors):
    #   h = w1 @ ((clip(x) - mean) * inv_std) + b1
    #     = (w1 * inv_std) @ clip(x) + (b1 - w1 @ (mean * inv_std))
    mean = jnp.asarray(IMAGENET_MEAN, jnp.float32)
    inv_std = 1.0 / jnp.asarray(IMAGENET_STD, jnp.float32)
    w1f = w1 * inv_std[None, :]                          # (Hd, C)
    b1f = b1[:, 0] - w1 @ (mean * inv_std)               # (Hd,)

    # kernel-friendly layouts (plain-JAX glue on tiny tensors)
    x3 = x.reshape(B, C, HW)
    w1k = jnp.transpose(w1f).reshape(C, Hd, 1)
    b1k = b1f.reshape(1, Hd, 1)
    # fold the global-average-pool 1/HW into the FC weights, pad classes to 128
    w2k = jnp.zeros((Hd, NCp), jnp.float32).at[:, :NC].set(w2 * (1.0 / HW))
    b2k = jnp.zeros((1, NCp), jnp.float32).at[:, :NC].set(b2)

    vmem = lambda: pl.BlockSpec(memory_space=pltpu.MemorySpace.VMEM)
    out = pl.pallas_call(
        imagenet_head_kernel,
        out_shape=jax.ShapeDtypeStruct((B, NCp), jnp.float32),
        in_specs=[vmem() for _ in range(5)],
        out_specs=vmem(),
        # No grid: the whole problem fits comfortably in VMEM at these sizes
        # (B*C*HW + B*Hd*HW f32 << 16 MiB on every generation).
        # TODO(synk): for realistic 224x224 images, tile HW as an "arbitrary"
        # grid axis with a pl.when-guarded pooled-sum accumulator sized for the
        # per-generation VMEM budget (v7x: 64 MiB total).
    )(x3, w1k, b1k, w2k, b2k)

    return out[:, :NC]


def _reference_forward(x, params):
    """Pure-JAX reference (same math, unfolded) for a correctness check."""
    w1, b1, w2, b2 = params
    B, C, H, W = x.shape
    mean = jnp.array(IMAGENET_MEAN, jnp.float32).reshape(1, 3, 1, 1)
    std = jnp.array(IMAGENET_STD, jnp.float32).reshape(1, 3, 1, 1)
    xn = (jnp.clip(x, 0.0, 1.0) - mean) / std
    xf = xn.reshape(B, C, H * W)
    h = jnp.maximum(jnp.einsum("hc,bcp->bhp", w1, xf) + b1[None], 0.0)
    pooled = h.mean(axis=2)  # (B, Hd)
    return pooled @ w2 + b2


if __name__ == "__main__":
    key = jax.random.PRNGKey(0)
    kx, k1, k2, k3, k4 = jax.random.split(key, 5)

    B, C, H, W = 2, 3, 16, 16   # small synthetic ImageNet-style input (3-ch RGB)
    Hd, NC = 32, 16             # hidden channels, num classes (synthetic head)

    # input slightly outside [0, 1] so the clamp is exercised
    x = jax.random.uniform(kx, (B, C, H, W), jnp.float32, minval=-0.2, maxval=1.2)

    # deterministic synthetic parameters (no checkpoint loading)
    w1 = 0.1 * jax.random.normal(k1, (Hd, C), jnp.float32)
    b1 = 0.01 * jax.random.normal(k2, (Hd, 1), jnp.float32)
    w2 = 0.1 * jax.random.normal(k3, (Hd, NC), jnp.float32)
    b2 = 0.01 * jax.random.normal(k4, (1, NC), jnp.float32)
    params = (w1, b1, w2, b2)

    out = imagenet_pretrained_forward(x, params)
    out = jax.block_until_ready(out)

    ref = _reference_forward(x, params)
    assert out.shape == (B, NC)
    assert jnp.allclose(out, ref, atol=1e-4, rtol=1e-4), "kernel/reference mismatch"

    print("KERNEL_OK")
</pallas_src>

<mosaic_0001>
module attributes {stable_mosaic.version = 11 : i64} {
  func.func @imagenet_head_kernel(%arg0: memref<2x3x256xf32, #tpu.memory_space<vmem>>, %arg1: memref<3x32x1xf32, #tpu.memory_space<vmem>>, %arg2: memref<1x32x1xf32, #tpu.memory_space<vmem>>, %arg3: memref<32x128xf32, #tpu.memory_space<vmem>>, %arg4: memref<1x128xf32, #tpu.memory_space<vmem>>, %arg5: memref<2x128xf32, #tpu.memory_space<vmem>>) attributes {dimension_semantics = [], scalar_prefetch = 0 : i64, scratch_operands = 0 : i64, tpu.core_type = #tpu.core_type<tc>} {
    %c0 = arith.constant 0 : index
    %c0_0 = arith.constant 0 : index
    %c0_1 = arith.constant 0 : index
    %0 = vector.load %arg0[%c0, %c0_0, %c0_1] : memref<2x3x256xf32, #tpu.memory_space<vmem>>, vector<2x3x256xf32>
    %cst = arith.constant 0.000000e+00 : f32
    %cst_2 = arith.constant 1.000000e+00 : f32
    %1 = vector.broadcast %cst : f32 to vector<2x3x256xf32>
    %2 = arith.maximumf %1, %0 : vector<2x3x256xf32>
    %3 = vector.broadcast %cst_2 : f32 to vector<2x3x256xf32>
    %4 = arith.minimumf %3, %2 : vector<2x3x256xf32>
    %c0_3 = arith.constant 0 : index
    %c0_4 = arith.constant 0 : index
    %c0_5 = arith.constant 0 : index
    %5 = vector.load %arg1[%c0_3, %c0_4, %c0_5] : memref<3x32x1xf32, #tpu.memory_space<vmem>>, vector<1x32x1xf32>
    %6 = vector.extract_strided_slice %4 {offsets = [0, 0, 0], sizes = [2, 1, 256], strides = [1, 1, 1]} : vector<2x3x256xf32> to vector<2x1x256xf32>
    %7 = vector.broadcast %5 : vector<1x32x1xf32> to vector<2x32x256xf32>
    %8 = vector.broadcast %6 : vector<2x1x256xf32> to vector<2x32x256xf32>
    %9 = arith.mulf %7, %8 : vector<2x32x256xf32>
    %c1 = arith.constant 1 : index
    %c0_6 = arith.constant 0 : index
    %c0_7 = arith.constant 0 : index
    %10 = vector.load %arg1[%c1, %c0_6, %c0_7] : memref<3x32x1xf32, #tpu.memory_space<vmem>>, vector<1x32x1xf32>
    %11 = vector.extract_strided_slice %4 {offsets = [0, 1, 0], sizes = [2, 1, 256], strides = [1, 1, 1]} : vector<2x3x256xf32> to vector<2x1x256xf32>
    %12 = vector.broadcast %10 : vector<1x32x1xf32> to vector<2x32x256xf32>
    %13 = vector.broadcast %11 : vector<2x1x256xf32> to vector<2x32x256xf32>
    %14 = arith.mulf %12, %13 : vector<2x32x256xf32>
    %15 = arith.addf %9, %14 : vector<2x32x256xf32>
    %c2 = arith.constant 2 : index
    %c0_8 = arith.constant 0 : index
    %c0_9 = arith.constant 0 : index
    %16 = vector.load %arg1[%c2, %c0_8, %c0_9] : memref<3x32x1xf32, #tpu.memory_space<vmem>>, vector<1x32x1xf32>
    %17 = vector.extract_strided_slice %4 {offsets = [0, 2, 0], sizes = [2, 1, 256], strides = [1, 1, 1]} : vector<2x3x256xf32> to vector<2x1x256xf32>
    %18 = vector.broadcast %16 : vector<1x32x1xf32> to vector<2x32x256xf32>
    %19 = vector.broadcast %17 : vector<2x1x256xf32> to vector<2x32x256xf32>
    %20 = arith.mulf %18, %19 : vector<2x32x256xf32>
    %21 = arith.addf %15, %20 : vector<2x32x256xf32>
    %c0_10 = arith.constant 0 : index
    %c0_11 = arith.constant 0 : index
    %c0_12 = arith.constant 0 : index
    %22 = vector.load %arg2[%c0_10, %c0_11, %c0_12] : memref<1x32x1xf32, #tpu.memory_space<vmem>>, vector<1x32x1xf32>
    %23 = vector.broadcast %22 : vector<1x32x1xf32> to vector<2x32x256xf32>
    %24 = arith.addf %21, %23 : vector<2x32x256xf32>
    %cst_13 = arith.constant 0.000000e+00 : f32
    %25 = vector.broadcast %cst_13 : f32 to vector<2x32x256xf32>
    %26 = arith.maximumf %24, %25 : vector<2x32x256xf32>
    %cst_14 = arith.constant dense<0.000000e+00> : vector<2x32xf32>
    %27 = vector.multi_reduction <add>, %26, %cst_14 [2] : vector<2x32x256xf32> to vector<2x32xf32>
    %c0_15 = arith.constant 0 : index
    %c0_16 = arith.constant 0 : index
    %28 = vector.load %arg3[%c0_15, %c0_16] : memref<32x128xf32, #tpu.memory_space<vmem>>, vector<32x128xf32>
    %cst_17 = arith.constant dense<0.000000e+00> : vector<2x128xf32>
    %29 = tpu.matmul %27, %28, %cst_17 {dimension_numbers = #tpu.dot_dimension_numbers<[1], [0], [0], [1], [0, 0, 1, 1], [], []>} : vector<2x32xf32>, vector<32x128xf32>, vector<2x128xf32> -> vector<2x128xf32>
    %c0_18 = arith.constant 0 : index
    %c0_19 = arith.constant 0 : index
    %30 = vector.load %arg4[%c0_18, %c0_19] : memref<1x128xf32, #tpu.memory_space<vmem>>, vector<1x128xf32>
    %31 = vector.broadcast %30 : vector<1x128xf32> to vector<2x128xf32>
    %32 = arith.addf %29, %31 : vector<2x128xf32>
    %c0_20 = arith.constant 0 : index
    %c0_21 = arith.constant 0 : index
    %33 = vector.load %arg5[%c0_20, %c0_21] : memref<2x128xf32, #tpu.memory_space<vmem>>, vector<2x128xf32>
    tpu.vector_store %arg5[%c0_20, %c0_21], %32 {strides = array<i32>} : memref<2x128xf32, #tpu.memory_space<vmem>>, vector<2x128xf32>,
    return
  }
}

</mosaic_0001>

<llo_original>
// kernel: tpu_custom_call.1
$region0: #{tpu_custom_call.1}
  #allocation0 [shape = 'u32[]', space=smem, size = 0x4, offset = 0x4, fixed_abs, tag = 'smem constant byte address 0x4 - core index']
  #allocation1 [shape = 'u32[144,128]{1,0:T(1,128)}', space=vmem, size = 0x12000, scoped, tag = 'internal scratch']
  %s0 = inlined_call_operand.vmem [shape: f32[2,3,256], index: 0, kind: input, shape index: {}]
  %s1 = inlined_call_operand.vmem [shape: f32[3,32,1], index: 1, kind: input, shape index: {}]
  %s2 = inlined_call_operand.vmem [shape: f32[1,32,1], index: 2, kind: input, shape index: {}]
  %s3 = inlined_call_operand.vmem [shape: f32[32,128], index: 3, kind: input, shape index: {}]
  %s4 = inlined_call_operand.vmem [shape: f32[1,128], index: 4, kind: input, shape index: {}]
  %s5 = inlined_call_operand.hbm [shape: f32[2,128], index: 5, kind: output, shape index: {}]
  %s6 = sld [smem:[#allocation0]]
  $region30: #{tpu_custom_call.1} parent=0
    _
  %s8 = ssub.s32 1, %s6
  %s9 = scalar_select 0, %s8, %s6
  $region1: #{tpu_custom_call.1} parent=0
    #allocation2 [shape = 'u8[1024]{0}', space=vmem, size = 0x400, scoped, tag = 'output window, operand 0, single buffered']
    #allocation3 [shape = 's32[1]{0}', space=sflag, size = 0x4, scoped, tag = 'scoped memory for tpu_custom_call.1']
    %10 = vsyncpa [#allocation3], 0
    // Predicated region
    $region2: #{tpu_custom_call.1} parent=1 // pred_check
      _
    $region3: #{tpu_custom_call.1} parent=1 // pred_check_branch
      %12 = sbr.rel (0) target = $region5
    $region4: #{tpu_custom_call.1} parent=1 // pred_region
      _
    $region5: #{tpu_custom_call.1} parent=1 // pred_fallthru
      _
    // Predicated region
    $region6: #{tpu_custom_call.1} parent=1 // pred_check
      _
    $region7: #{tpu_custom_call.1} parent=1 // pred_check_branch
      %14 = sbr.rel (0) target = $region9
    $region8: #{tpu_custom_call.1} parent=1 // pred_region
      _
    $region9: #{tpu_custom_call.1} parent=1 // pred_fallthru
      _
    // Predicated region
    $region10: #{tpu_custom_call.1} parent=1 // pred_check
      _
    $region11: #{tpu_custom_call.1} parent=1 // pred_check_branch
      %16 = sbr.rel (0) target = $region13
    $region12: #{tpu_custom_call.1} parent=1 // pred_region
      _
    $region13: #{tpu_custom_call.1} parent=1 // pred_fallthru
      _
    // Predicated region
    $region14: #{tpu_custom_call.1} parent=1 // pred_check
      _
    $region15: #{tpu_custom_call.1} parent=1 // pred_check_branch
      %18 = sbr.rel (0) target = $region17
    $region16: #{tpu_custom_call.1} parent=1 // pred_region
      _
    $region17: #{tpu_custom_call.1} parent=1 // pred_fallthru
      _
    // Predicated region
    $region18: #{tpu_custom_call.1} parent=1 // pred_check
      _
    $region19: #{tpu_custom_call.1} parent=1 // pred_check_branch
      %20 = sbr.rel (0) target = $region21
    $region20: #{tpu_custom_call.1} parent=1 // pred_region
      _
    $region21: #{tpu_custom_call.1} parent=1 // pred_fallthru
      _
    %v21 = vld [vmem:[%s0] sm:$0x77]
    %v22 = vld [vmem:[%s0 + $0x8] sm:$0x77]
    %v23 = vmax.f32 %v21, 0.0
    %v24 = vmax.f32 %v22, 0.0
    %v25 = vmin.f32 %v23, 1.0
    %v26 = vmin.f32 %v24, 1.0
    %v27 = vld [vmem:[%s1] sm:$0xff]
    %v28 = vld [vmem:[%s1 + $0x8] sm:$0xff]
    %v29 = vld [vmem:[%s1 + $0x10] sm:$0xff]
    %v30 = vld [vmem:[%s1 + $0x18] sm:$0xff]
    %32 = vset.pattern.permute.xlu0 0
    %33 = vperm.xlu0 %32, %v27
    %v34 = vpop.permute.xlu0 %33
    %37 = vset.pattern.permute.xlu0 0
    %38 = vperm.xlu0 %37, %v28
    %v39 = vpop.permute.xlu0 %38
    %42 = vset.pattern.permute.xlu0 0
    %43 = vperm.xlu0 %42, %v29
    %v44 = vpop.permute.xlu0 %43
    %47 = vset.pattern.permute.xlu0 0
    %48 = vperm.xlu0 %47, %v30
    %v49 = vpop.permute.xlu0 %48
    %v53 = vlaneseq
    %v54 = vshrl.u32 %v53, 7
    %v55 = vsub.s32 0, %v54
    %v56 = vrot.slane %v25, %v55
    %v57 = vlaneseq
    %v58 = vshrl.u32 %v57, 7
    %v59 = vsub.s32 4, %v58
    %v60 = vrot.slane %v25, %v59
    %v61 = vlaneseq
    %v62 = vshrl.u32 %v61, 7
    %v63 = vsub.s32 0, %v62
    %v64 = vrot.slane %v26, %v63
    %v65 = vlaneseq
    %v66 = vshrl.u32 %v65, 7
    %v67 = vsub.s32 4, %v66
    %v68 = vrot.slane %v26, %v67
    %v73 = vlaneseq
    %v74 = vshrl.u32 %v73, 7
    %v75 = vsub.s32 0, %v74
    %v76 = vrot.slane %v56, %v75
    %v77 = vlaneseq
    %v78 = vshrl.u32 %v77, 7
    %v79 = vsub.s32 0, %v78
    %v80 = vrot.slane %v60, %v79
    %v81 = vlaneseq
    %v82 = vshrl.u32 %v81, 7
    %v83 = vsub.s32 0, %v82
    %v84 = vrot.slane %v64, %v83
    %v85 = vlaneseq
    %v86 = vshrl.u32 %v85, 7
    %v87 = vsub.s32 0, %v86
    %v88 = vrot.slane %v68, %v87
    %v89 = vmul.f32 %v34, %v76
    %v90 = vmul.f32 %v34, %v80
    %v91 = vmul.f32 %v39, %v76
    %v92 = vmul.f32 %v39, %v80
    %v93 = vmul.f32 %v44, %v76
    %v94 = vmul.f32 %v44, %v80
    %v95 = vmul.f32 %v49, %v76
    %v96 = vmul.f32 %v49, %v80
    %v97 = vmul.f32 %v34, %v84
    %v98 = vmul.f32 %v34, %v88
    %v99 = vmul.f32 %v39, %v84
    %v100 = vmul.f32 %v39, %v88
    %v101 = vmul.f32 %v44, %v84
    %v102 = vmul.f32 %v44, %v88
    %v103 = vmul.f32 %v49, %v84
    %v104 = vmul.f32 %v49, %v88
    %s105 = scalar_lea.vmem %s1, 32
    %v106 = vld [vmem:[%s105] sm:$0xff]
    %v107 = vld [vmem:[%s105 + $0x8] sm:$0xff]
    %v108 = vld [vmem:[%s105 + $0x10] sm:$0xff]
    %v109 = vld [vmem:[%s105 + $0x18] sm:$0xff]
    %111 = vset.pattern.permute.xlu0 0
    %112 = vperm.xlu0 %111, %v106
    %v113 = vpop.permute.xlu0 %112
    %116 = vset.pattern.permute.xlu0 0
    %117 = vperm.xlu0 %116, %v107
    %v118 = vpop.permute.xlu0 %117
    %121 = vset.pattern.permute.xlu0 0
    %122 = vperm.xlu0 %121, %v108
    %v123 = vpop.permute.xlu0 %122
    %126 = vset.pattern.permute.xlu0 0
    %127 = vperm.xlu0 %126, %v109
    %v128 = vpop.permute.xlu0 %127
    %v130 = vlaneseq
    %v131 = vshrl.u32 %v130, 7
    %v132 = vsub.s32 1, %v131
    %v133 = vrot.slane %v25, %v132
    %v134 = vlaneseq
    %v135 = vshrl.u32 %v134, 7
    %v136 = vsub.s32 5, %v135
    %v137 = vrot.slane %v25, %v136
    %v138 = vlaneseq
    %v139 = vshrl.u32 %v138, 7
    %v140 = vsub.s32 1, %v139
    %v141 = vrot.slane %v26, %v140
    %v142 = vlaneseq
    %v143 = vshrl.u32 %v142, 7
    %v144 = vsub.s32 5, %v143
    %v145 = vrot.slane %v26, %v144
    %v150 = vlaneseq
    %v151 = vshrl.u32 %v150, 7
    %v152 = vsub.s32 1, %v151
    %v153 = vrot.slane %v133, %v152
    %v154 = vlaneseq
    %v155 = vshrl.u32 %v154, 7
    %v156 = vsub.s32 1, %v155
    %v157 = vrot.slane %v137, %v156
    %v158 = vlaneseq
    %v159 = vshrl.u32 %v158, 7
    %v160 = vsub.s32 1, %v159
    %v161 = vrot.slane %v141, %v160
    %v162 = vlaneseq
    %v163 = vshrl.u32 %v162, 7
    %v164 = vsub.s32 1, %v163
    %v165 = vrot.slane %v145, %v164
    %v166 = vmul.f32 %v113, %v153
    %v167 = vmul.f32 %v113, %v157
    %v168 = vmul.f32 %v118, %v153
    %v169 = vmul.f32 %v118, %v157
    %v170 = vmul.f32 %v123, %v153
    %v171 = vmul.f32 %v123, %v157
    %v172 = vmul.f32 %v128, %v153
    %v173 = vmul.f32 %v128, %v157
    %v174 = vmul.f32 %v113, %v161
    %v175 = vmul.f32 %v113, %v165
    %v176 = vmul.f32 %v118, %v161
    %v177 = vmul.f32 %v118, %v165
    %v178 = vmul.f32 %v123, %v161
    %v179 = vmul.f32 %v123, %v165
    %v180 = vmul.f32 %v128, %v161
    %v181 = vmul.f32 %v128, %v165
    %v182 = vadd.f32 %v89, %v166
    %v183 = vadd.f32 %v90, %v167
    %v184 = vadd.f32 %v91, %v168
    %v185 = vadd.f32 %v92, %v169
    %v186 = vadd.f32 %v93, %v170
    %v187 = vadd.f32 %v94, %v171
    %v188 = vadd.f32 %v95, %v172
    %v189 = vadd.f32 %v96, %v173
    %v190 = vadd.f32 %v97, %v174
    %v191 = vadd.f32 %v98, %v175
    %v192 = vadd.f32 %v99, %v176
    %v193 = vadd.f32 %v100, %v177
    %v194 = vadd.f32 %v101, %v178
    %v195 = vadd.f32 %v102, %v179
    %v196 = vadd.f32 %v103, %v180
    %v197 = vadd.f32 %v104, %v181
    %s198 = scalar_lea.vmem %s1, 64
    %v199 = vld [vmem:[%s198] sm:$0xff]
    %v200 = vld [vmem:[%s198 + $0x8] sm:$0xff]
    %v201 = vld [vmem:[%s198 + $0x10] sm:$0xff]
    %v202 = vld [vmem:[%s198 + $0x18] sm:$0xff]
    %204 = vset.pattern.permute.xlu0 0
    %205 = vperm.xlu0 %204, %v199
    %v206 = vpop.permute.xlu0 %205
    %209 = vset.pattern.permute.xlu0 0
    %210 = vperm.xlu0 %209, %v200
    %v211 = vpop.permute.xlu0 %210
    %214 = vset.pattern.permute.xlu0 0
    %215 = vperm.xlu0 %214, %v201
    %v216 = vpop.permute.xlu0 %215
    %219 = vset.pattern.permute.xlu0 0
    %220 = vperm.xlu0 %219, %v202
    %v221 = vpop.permute.xlu0 %220
    %v223 = vlaneseq
    %v224 = vshrl.u32 %v223, 7
    %v225 = vsub.s32 2, %v224
    %v226 = vrot.slane %v25, %v225
    %v227 = vlaneseq
    %v228 = vshrl.u32 %v227, 7
    %v229 = vsub.s32 6, %v228
    %v230 = vrot.slane %v25, %v229
    %v231 = vlaneseq
    %v232 = vshrl.u32 %v231, 7
    %v233 = vsub.s32 2, %v232
    %v234 = vrot.slane %v26, %v233
    %v235 = vlaneseq
    %v236 = vshrl.u32 %v235, 7
    %v237 = vsub.s32 6, %v236
    %v238 = vrot.slane %v26, %v237
    %v243 = vlaneseq
    %v244 = vshrl.u32 %v243, 7
    %v245 = vsub.s32 2, %v244
    %v246 = vrot.slane %v226, %v245
    %v247 = vlaneseq
    %v248 = vshrl.u32 %v247, 7
    %v249 = vsub.s32 2, %v248
    %v250 = vrot.slane %v230, %v249
    %v251 = vlaneseq
    %v252 = vshrl.u32 %v251, 7
    %v253 = vsub.s32 2, %v252
    %v254 = vrot.slane %v234, %v253
    %v255 = vlaneseq
    %v256 = vshrl.u32 %v255, 7
    %v257 = vsub.s32 2, %v256
    %v258 = vrot.slane %v238, %v257
    %v259 = vmul.f32 %v206, %v246
    %v260 = vmul.f32 %v206, %v250
    %v261 = vmul.f32 %v211, %v246
    %v262 = vmul.f32 %v211, %v250
    %v263 = vmul.f32 %v216, %v246
    %v264 = vmul.f32 %v216, %v250
    %v265 = vmul.f32 %v221, %v246
    %v266 = vmul.f32 %v221, %v250
    %v267 = vmul.f32 %v206, %v254
    %v268 = vmul.f32 %v206, %v258
    %v269 = vmul.f32 %v211, %v254
    %v270 = vmul.f32 %v211, %v258
    %v271 = vmul.f32 %v216, %v254
    %v272 = vmul.f32 %v216, %v258
    %v273 = vmul.f32 %v221, %v254
    %v274 = vmul.f32 %v221, %v258
    %v275 = vadd.f32 %v182, %v259
    %v276 = vadd.f32 %v183, %v260
    %v277 = vadd.f32 %v184, %v261
    %v278 = vadd.f32 %v185, %v262
    %v279 = vadd.f32 %v186, %v263
    %v280 = vadd.f32 %v187, %v264
    %v281 = vadd.f32 %v188, %v265
    %v282 = vadd.f32 %v189, %v266
    %v283 = vadd.f32 %v190, %v267
    %v284 = vadd.f32 %v191, %v268
    %v285 = vadd.f32 %v192, %v269
    %v286 = vadd.f32 %v193, %v270
    %v287 = vadd.f32 %v194, %v271
    %v288 = vadd.f32 %v195, %v272
    %v289 = vadd.f32 %v196, %v273
    %v290 = vadd.f32 %v197, %v274
    %v291 = vld [vmem:[%s2] sm:$0xff]
    %v292 = vld [vmem:[%s2 + $0x8] sm:$0xff]
    %v293 = vld [vmem:[%s2 + $0x10] sm:$0xff]
    %v294 = vld [vmem:[%s2 + $0x18] sm:$0xff]
    %296 = vset.pattern.permute.xlu0 0
    %297 = vperm.xlu0 %296, %v291
    %v298 = vpop.permute.xlu0 %297
    %301 = vset.pattern.permute.xlu0 0
    %302 = vperm.xlu0 %301, %v292
    %v303 = vpop.permute.xlu0 %302
    %306 = vset.pattern.permute.xlu0 0
    %307 = vperm.xlu0 %306, %v293
    %v308 = vpop.permute.xlu0 %307
    %311 = vset.pattern.permute.xlu0 0
    %312 = vperm.xlu0 %311, %v294
    %v313 = vpop.permute.xlu0 %312
    %v315 = vadd.f32 %v275, %v298
    %v316 = vadd.f32 %v276, %v298
    %v317 = vadd.f32 %v277, %v303
    %v318 = vadd.f32 %v278, %v303
    %v319 = vadd.f32 %v279, %v308
    %v320 = vadd.f32 %v280, %v308
    %v321 = vadd.f32 %v281, %v313
    %v322 = vadd.f32 %v282, %v313
    %v323 = vadd.f32 %v283, %v298
    %v324 = vadd.f32 %v284, %v298
    %v325 = vadd.f32 %v285, %v303
    %v326 = vadd.f32 %v286, %v303
    %v327 = vadd.f32 %v287, %v308
    %v328 = vadd.f32 %v288, %v308
    %v329 = vadd.f32 %v289, %v313
    %v330 = vadd.f32 %v290, %v313
    %v331 = vmax.f32 %v315, 0.0
    %v332 = vmax.f32 %v316, 0.0
    %v333 = vmax.f32 %v317, 0.0
    %v334 = vmax.f32 %v318, 0.0
    %v335 = vmax.f32 %v319, 0.0
    %v336 = vmax.f32 %v320, 0.0
    %v337 = vmax.f32 %v321, 0.0
    %v338 = vmax.f32 %v322, 0.0
    %v339 = vmax.f32 %v323, 0.0
    %v340 = vmax.f32 %v324, 0.0
    %v341 = vmax.f32 %v325, 0.0
    %v342 = vmax.f32 %v326, 0.0
    %v343 = vmax.f32 %v327, 0.0
    %v344 = vmax.f32 %v328, 0.0
    %v345 = vmax.f32 %v329, 0.0
    %v346 = vmax.f32 %v330, 0.0
    %v347 = vadd.f32 %v331, %v332
    %348 = vadd.xlane.f32.xlu0 %v347
    %v349 = vpop.xlane.xlu0 %348
    %v350 = vadd.f32 %v333, %v334
    %351 = vadd.xlane.f32.xlu0 %v350
    %v352 = vpop.xlane.xlu0 %351
    %v353 = vadd.f32 %v335, %v336
    %354 = vadd.xlane.f32.xlu0 %v353
    %v355 = vpop.xlane.xlu0 %354
    %v356 = vadd.f32 %v337, %v338
    %357 = vadd.xlane.f32.xlu0 %v356
    %v358 = vpop.xlane.xlu0 %357
    %v359 = vadd.f32 %v339, %v340
    %360 = vadd.xlane.f32.xlu0 %v359
    %v361 = vpop.xlane.xlu0 %360
    %v362 = vadd.f32 %v341, %v342
    %363 = vadd.xlane.f32.xlu0 %v362
    %v364 = vpop.xlane.xlu0 %363
    %v365 = vadd.f32 %v343, %v344
    %366 = vadd.xlane.f32.xlu0 %v365
    %v367 = vpop.xlane.xlu0 %366
    %v368 = vadd.f32 %v345, %v346
    %369 = vadd.xlane.f32.xlu0 %v368
    %v370 = vpop.xlane.xlu0 %369
    %v371 = vld [vmem:[%s3] sm:$0xff]
    %v372 = vld [vmem:[%s3 + $0x8] sm:$0xff]
    %v373 = vld [vmem:[%s3 + $0x10] sm:$0xff]
    %v374 = vld [vmem:[%s3 + $0x18] sm:$0xff]
    %v375 = vld [vmem:[%s4] sm:$0x1]
    %v377 = vlaneseq
    %v378 = vshrl.u32 %v377, 7
    %v379 = vsub.s32 0, %v378
    %v380 = vrot.slane %v375, %v379
    %v390 = vlaneseq
    %v391 = vand.u32 %v390, 127
    %v392 = vlaneseq
    %v393 = vshrl.u32 %v392, 7
    %v394 = vsub.s32 %v391, %v393
    %v395 = vrot.slane %v349, %v394
    %v396 = vadd.s32 %v391, 4294967288
    %v397 = vlaneseq
    %v398 = vshrl.u32 %v397, 7
    %v399 = vsub.s32 %v396, %v398
    %v400 = vrot.slane %v352, %v399
    %vm401 = vcmask 130112
    %v402 = vsel %vm401, %v400, %v395
    %v403 = vadd.s32 %v391, 4294967280
    %v404 = vlaneseq
    %v405 = vshrl.u32 %v404, 7
    %v406 = vsub.s32 %v403, %v405
    %v407 = vrot.slane %v355, %v406
    %vm408 = vcmask 195712
    %v409 = vsel %vm408, %v407, %v402
    %v410 = vadd.s32 %v391, 4294967272
    %v411 = vlaneseq
    %v412 = vshrl.u32 %v411, 7
    %v413 = vsub.s32 %v410, %v412
    %v414 = vrot.slane %v358, %v413
    %vm415 = vcmask 261312
    %v416 = vsel %vm415, %v414, %v409
    %v417 = vlaneseq
    %v418 = vshrl.u32 %v417, 7
    %v419 = vsub.s32 %v391, %v418
    %v420 = vrot.slane %v361, %v419
    %v421 = vlaneseq
    %v422 = vshrl.u32 %v421, 7
    %v423 = vsub.s32 %v396, %v422
    %v424 = vrot.slane %v364, %v423
    %v425 = vsel %vm401, %v424, %v420
    %v426 = vlaneseq
    %v427 = vshrl.u32 %v426, 7
    %v428 = vsub.s32 %v403, %v427
    %v429 = vrot.slane %v367, %v428
    %v430 = vsel %vm408, %v429, %v425
    %v431 = vlaneseq
    %v432 = vshrl.u32 %v431, 7
    %v433 = vsub.s32 %v410, %v432
    %v434 = vrot.slane %v370, %v433
    %v435 = vsel %vm415, %v434, %v430
    %vm436 = vcmask 1041409
    %v437 = vsel %vm436, %v435, %v416
    %vm438 = vcmask 261120
    %v439 = vsel %vm438, %v437, 0
    %441 = vmatprep.subr.mxu0 0.0
    %442 = vmatpush1.msra.mxu0 %v371
    %443 = vmatprep.subr.mxu0 0.0
    %444 = vmatpush1.msra.mxu0 %v372
    %445 = vmatprep.subr.mxu0 0.0
    %446 = vmatpush1.msra.mxu0 %v373
    %447 = vmatprep.subr.mxu0 0.0
    %448 = vmatpush1.msra.mxu0 %v374
    %449 = vmatprep.subr.mxu0 0.0
    %450 = vmatpush1.msra.mxu0 0.0
    %451 = vmatprep.subr.mxu0 0.0
    %452 = vmatpush1.msra.mxu0 0.0
    %453 = vmatprep.subr.mxu0 0.0
    %454 = vmatpush1.msra.mxu0 0.0
    %455 = vmatprep.subr.mxu0 0.0
    %456 = vmatpush1.msra.mxu0 0.0
    %457 = vmatprep.subr.mxu0 0.0
    %458 = vmatpush1.msra.mxu0 0.0
    %459 = vmatprep.subr.mxu0 0.0
    %460 = vmatpush1.msra.mxu0 0.0
    %461 = vmatprep.subr.mxu0 0.0
    %462 = vmatpush1.msra.mxu0 0.0
    %463 = vmatprep.subr.mxu0 0.0
    %464 = vmatpush1.msra.mxu0 0.0
    %465 = vmatprep.subr.mxu0 0.0
    %466 = vmatpush1.msra.mxu0 0.0
    %467 = vmatprep.subr.mxu0 0.0
    %468 = vmatpush1.msra.mxu0 0.0
    %469 = vmatprep.subr.mxu0 0.0
    %470 = vmatpush1.msra.mxu0 0.0
    %471 = vmatprep.subr.mxu0 0.0
    %472 = vmatpush1.msra.mxu0 0.0
    %473 = vmatprep.subr.mxu0 0.0
    %474 = vmatpush1.msra.mxu0 0.0
    %475 = vmatprep.subr.mxu0 0.0
    %476 = vmatpush1.msra.mxu0 0.0
    %477 = vmatprep.subr.mxu0 0.0
    %478 = vmatpush1.msra.mxu0 0.0
    %479 = vmatprep.subr.mxu0 0.0
    %480 = vmatpush1.msra.mxu0 0.0
    %481 = vmatprep.subr.mxu0 0.0
    %482 = vmatpush1.msra.mxu0 0.0
    %483 = vmatprep.subr.mxu0 0.0
    %484 = vmatpush1.msra.mxu0 0.0
    %485 = vmatprep.subr.mxu0 0.0
    %486 = vmatpush1.msra.mxu0 0.0
    %487 = vmatprep.subr.mxu0 0.0
    %488 = vmatpush1.msra.mxu0 0.0
    %489 = vmatprep.subr.mxu0 0.0
    %490 = vmatpush1.msra.mxu0 0.0
    %491 = vmatprep.subr.mxu0 0.0
    %492 = vmatpush1.msra.mxu0 0.0
    %493 = vmatprep.subr.mxu0 0.0
    %494 = vmatpush1.msra.mxu0 0.0
    %495 = vmatprep.subr.mxu0 0.0
    %496 = vmatpush1.msra.mxu0 0.0
    %497 = vmatprep.subr.mxu0 0.0
    %498 = vmatpush1.msra.mxu0 0.0
    %499 = vmatprep.subr.mxu0 0.0
    %500 = vmatpush1.msra.mxu0 0.0
    %501 = vmatprep.subr.mxu0 0.0
    %502 = vmatpush1.msra.mxu0 0.0
    %503 = vmatprep.subr.mxu0 0.0
    %504 = vmatpush1.msra.mxu0 0.0
    %505 = vmatprep.mubr.f32.mxu0 0.0
    %506 = vmatmul.mubr.f32.gmra.mrb[0].mxu0 %v439
    %v507 = vpop.f32.mrb[0].mxu0
    %v508 = vadd.f32 %v380, %v507
    %v509 = vpop.f32.mrb[0].mxu0
    %510 = vdwg.mxu0
    %511 = vst [vmem:[#allocation2] sm:$0x3] %v508
    // Predicated region
    $region22: #{tpu_custom_call.1} parent=1 // pred_check
      _
    $region23: #{tpu_custom_call.1} parent=1 // pred_check_branch
      %513 = sbr.rel (0) target = $region25
    $region24: #{tpu_custom_call.1} parent=1 // pred_region
      %s515 = ssub.s32 32, 32
      %516 = vsyncadd [#allocation3], %s515
      %s518 = sshll.u32 [#allocation2], 4
      %s519 = int_to_ptr.vmem [resolvable:$true] %s518
      %521 = dma.vmem_to_hbm [thread:$0]  %s519, 32, %s5, [#allocation3]
    $region25: #{tpu_custom_call.1} parent=1 // pred_fallthru
      _
    // Predicated region
    $region26: #{tpu_custom_call.1} parent=1 // pred_check
      _
    $region27: #{tpu_custom_call.1} parent=1 // pred_check_branch
      %523 = sbr.rel (0) target = $region29
    $region28: #{tpu_custom_call.1} parent=1 // pred_region
      %524 = dma.done [#allocation3], 32
    $region29: #{tpu_custom_call.1} parent=1 // pred_fallthru
      _
    %525 = vsyncpa [#allocation3], 1

</llo_original>
